<compile_context>
chip_gen: v7x
topology: tpu7x:2x2x1
jax: 0.10.0
libtpu: 0.0.40
codegen_flags: <defaults>
</compile_context>

<pallas_src>
import math
from functools import partial

import jax
import jax.numpy as jnp
from jax.experimental import pallas as pl
from jax.experimental.pallas import tpu as pltpu


# ----------------------------- VMEM budget -----------------------------

_VMEM_LIMIT_CACHE = None


def _vmem_limit():
    """Generation-aware scoped-VMEM limit (v5e/v6e: 96 MiB, v7x: 48 MiB)."""
    global _VMEM_LIMIT_CACHE
    if _VMEM_LIMIT_CACHE is None:
        try:
            cap = int(pltpu.get_tpu_info().vmem_capacity_bytes)
        except Exception:
            cap = 64 * 1024 * 1024
        _VMEM_LIMIT_CACHE = max(32 * 1024 * 1024,
                                min((cap * 3) // 4, 96 * 1024 * 1024))
    return _VMEM_LIMIT_CACHE


def _divisor_tile(n, cap=256):
    """Largest multiple-of-8 divisor of n that is <= cap, or None."""
    best = None
    for d in range(8, min(n, cap) + 1, 8):
        if n % d == 0:
            best = d
    return best


# ----------------------------- fused linear -----------------------------

def _fused_linear_kernel(*refs, prologue, act, has_add, post_ln, y_scale, eps):
    """o = post_ln(add + y_scale * act(prologue(x) @ w + b))  (epilogue math f32)."""
    o_ref = refs[-1]
    idx = 0
    x = refs[idx][...]
    idx += 1

    if prologue == "ln":
        g = refs[idx][...]
        beta = refs[idx + 1][...]
        idx += 2
        xf = x.astype(jnp.float32)
        mu = jnp.mean(xf, axis=-1, keepdims=True)
        xc = xf - mu
        var = jnp.mean(xc * xc, axis=-1, keepdims=True)
        x = xc * jax.lax.rsqrt(var + eps) * g + beta

    xb = x.astype(jnp.bfloat16)                        # bf16 MXU operand
    w = refs[idx][...]
    b = refs[idx + 1][...]
    idx += 2
    y = jnp.dot(xb, w.astype(jnp.bfloat16),
                preferred_element_type=jnp.float32) + b

    if act == "swish":
        y = y * jax.nn.sigmoid(y)
    elif act == "glu":
        n = y.shape[-1] // 2                           # value | gate split
        y = y[:, :n] * jax.nn.sigmoid(y[:, n:])

    if y_scale != 1.0:
        y = y * y_scale
    if has_add:
        y = refs[idx][...] + y
        idx += 1

    if post_ln:                                        # fused per-layer ln_out
        g2 = refs[idx][...]
        b2 = refs[idx + 1][...]
        idx += 2
        mu = jnp.mean(y, axis=-1, keepdims=True)
        yc = y - mu
        var = jnp.mean(yc * yc, axis=-1, keepdims=True)
        y = yc * jax.lax.rsqrt(var + eps) * g2 + b2

    o_ref[...] = y.astype(o_ref.dtype)


def fused_linear(x, w, b, *, prologue="none", p_g=None, p_b=None,
                 act="none", add=None, add_spec=None,
                 post_ln=False, post_g=None, post_b=None,
                 y_scale=1.0, tm=None, tn=None,
                 out_dtype=jnp.float32, eps=1e-5):
    """Tiled fused matmul.  x:(M,K), w:(K,Nw) bf16 (Nw=2N for GLU), b:(1,Nw).

    Default tn == N keeps the weight / bias blocks grid-resident (one HBM read
    per call) and computes prologues once per row tile."""
    M, K = x.shape
    Kw, Nw = w.shape
    assert Kw == K
    if act == "glu":
        assert Nw % 2 == 0
        N = Nw // 2
        tn = N                                   # full output width
    else:
        N = Nw
        tn = N if tn is None else min(tn, N)
    if post_ln:
        assert tn == N, "post-LN epilogue needs the full feature dim resident"
    tm = min(M, 512) if tm is None else tm
    grid = (pl.cdiv(M, tm), pl.cdiv(N, tn))
    full_w = (tn == N)

    row_k = pl.BlockSpec((1, K), lambda i, j: (0, 0))
    in_specs = [pl.BlockSpec((tm, K), lambda i, j: (i, 0))]
    args = [x]
    if prologue == "ln":
        in_specs += [row_k, row_k]
        args += [p_g, p_b]
    if full_w:
        in_specs += [pl.BlockSpec((K, Nw), lambda i, j: (0, 0)),
                     pl.BlockSpec((1, Nw), lambda i, j: (0, 0))]
    else:
        in_specs += [pl.BlockSpec((K, tn), lambda i, j: (0, j)),
                     pl.BlockSpec((1, tn), lambda i, j: (0, j))]
    args += [w, b]
    has_add = add is not None
    if has_add:
        in_specs.append(add_spec if add_spec is not None
                        else pl.BlockSpec((tm, tn), lambda i, j: (i, j)))
        args.append(add)
    if post_ln:
        row_n = pl.BlockSpec((1, N), lambda i, j: (0, 0))
        in_specs += [row_n, row_n]
        args += [post_g, post_b]

    return pl.pallas_call(
        partial(_fused_linear_kernel, prologue=prologue, act=act,
                has_add=has_add, post_ln=post_ln, y_scale=y_scale, eps=eps),
        out_shape=jax.ShapeDtypeStruct((M, N), out_dtype),
        grid=grid,
        in_specs=in_specs,
        out_specs=pl.BlockSpec((tm, tn), lambda i, j: (i, j)),
        compiler_params=pltpu.CompilerParams(
            dimension_semantics=("parallel", "parallel"),
            vmem_limit_bytes=_vmem_limit()),
    )(*args)


# ----------------------------- attention -----------------------------

def _mhsa_kernel(q_ref, k_ref, v_ref, o_ref):
    # q:(1,1,tq,dh), k/v:(1,1,T,dh) bf16 head-major; scale folded into Wq.
    q = q_ref[0, 0]
    k = k_ref[0, 0]
    v = v_ref[0, 0]
    s = jax.lax.dot_general(q, k, (((1,), (1,)), ((), ())),
                            preferred_element_type=jnp.float32)     # (tq, T)
    s = s - jnp.max(s, axis=-1, keepdims=True)
    p = jnp.exp(s)
    p = p * pl.reciprocal(jnp.sum(p, axis=-1, keepdims=True), approx=True)
    o_ref[0, 0] = jnp.dot(p.astype(jnp.bfloat16), v,
                          preferred_element_type=jnp.float32).astype(o_ref.dtype)


def attention(q, k, v, *, tq=None):
    """q,k,v: (B,H,T,dh) bf16 -> (B,H,T,dh) bf16.

    Grid (B,H,T/tq): B*H*nq parallel steps (keeps both v7x TCs busy) and only a
    (tq,T) f32 score block live per step instead of H x (T,T)."""
    # TODO(synk): for very long T also tile the KV axis (flash-style online softmax).
    B, H, T, dh = q.shape
    if tq is None:
        tq = _divisor_tile(T) or T
    if T % tq != 0:
        tq = T
    nq = T // tq
    return pl.pallas_call(
        _mhsa_kernel,
        out_shape=jax.ShapeDtypeStruct((B, H, T, dh), jnp.bfloat16),
        grid=(B, H, nq),
        in_specs=[pl.BlockSpec((1, 1, tq, dh), lambda b, h, i: (b, h, i, 0)),
                  pl.BlockSpec((1, 1, T, dh), lambda b, h, i: (b, h, 0, 0)),
                  pl.BlockSpec((1, 1, T, dh), lambda b, h, i: (b, h, 0, 0))],
        out_specs=pl.BlockSpec((1, 1, tq, dh), lambda b, h, i: (b, h, i, 0)),
        compiler_params=pltpu.CompilerParams(
            dimension_semantics=("parallel", "parallel", "parallel"),
            vmem_limit_bytes=_vmem_limit()),
    )(q, k, v)


# ----------------------------- fused conv module tail -----------------------------

def _conv_bn_pw2_kernel(h_ref, dw_w_ref, dw_b_ref, bn_g_ref, bn_b_ref,
                        bn_m_ref, bn_v_ref, w_ref, b_ref, res_ref, o_ref,
                        xp_ref, *, K, pad, eps):
    """Depthwise conv ('same') + BatchNorm(inference) + swish + pointwise conv2
    + residual, for one batch element."""
    T, D = h_ref.shape[1], h_ref.shape[2]
    # Stage zero-padded input once in VMEM scratch; taps read via pl.ds ref slices.
    if pad > 0:
        xp_ref[pl.ds(0, pad), :] = jnp.zeros((pad, D), jnp.float32)
        xp_ref[pl.ds(pad + T, pad), :] = jnp.zeros((pad, D), jnp.float32)
    xp_ref[pl.ds(pad, T), :] = h_ref[0].astype(jnp.float32)

    dw = dw_w_ref[...]                                   # (K, D)
    acc = xp_ref[pl.ds(0, T), :] * dw[0:1, :]
    for k in range(1, K):                                # static unroll over taps
        acc = acc + xp_ref[pl.ds(k, T), :] * dw[k:k + 1, :]
    acc = acc + dw_b_ref[...]

    y0 = (acc - bn_m_ref[...]) * jax.lax.rsqrt(bn_v_ref[...] + eps) \
        * bn_g_ref[...] + bn_b_ref[...]
    y = y0 * jax.nn.sigmoid(y0)                          # swish, f32

    out = jnp.dot(y.astype(jnp.bfloat16), w_ref[...].astype(jnp.bfloat16),
                  preferred_element_type=jnp.float32) + b_ref[...]
    o_ref[0] = (res_ref[0] + out).astype(o_ref.dtype)


def conv_bn_pw2(h3d, p, res3d, *, K, eps=1e-5):
    # TODO(synk): for very long T, add a T-tile grid axis with a (K-1)-row halo
    # so the per-step block stays within the v7x VMEM budget.
    assert K % 2 == 1, "conformer conv module assumes odd kernel size"
    B, T, D = h3d.shape
    pad = (K - 1) // 2
    row_d = pl.BlockSpec((1, D), lambda b: (0, 0))
    return pl.pallas_call(
        partial(_conv_bn_pw2_kernel, K=K, pad=pad, eps=eps),
        out_shape=jax.ShapeDtypeStruct((B, T, D), jnp.float32),
        grid=(B,),
        in_specs=[pl.BlockSpec((1, T, D), lambda b: (b, 0, 0)),    # h (GLU out, bf16)
                  pl.BlockSpec((K, D), lambda b: (0, 0)),          # dw weight
                  row_d, row_d, row_d, row_d, row_d,               # dw_b, bn g/b/m/v
                  pl.BlockSpec((D, D), lambda b: (0, 0)),          # pw2 weight
                  row_d,                                           # pw2 bias
                  pl.BlockSpec((1, T, D), lambda b: (b, 0, 0))],   # residual
        out_specs=pl.BlockSpec((1, T, D), lambda b: (b, 0, 0)),
        scratch_shapes=[pltpu.VMEM((T + K - 1, D), jnp.float32)],
        compiler_params=pltpu.CompilerParams(
            dimension_semantics=("parallel",),
            vmem_limit_bytes=_vmem_limit()),
    )(h3d, p["dw_w"], p["dw_b"], p["bn_g"], p["bn_b"], p["bn_m"], p["bn_v"],
      p["pw2"]["w"], p["pw2"]["b"], res3d)


# ----------------------------- parameter setup -----------------------------

def _xavier(key, d_in, d_out):
    lim = math.sqrt(6.0 / (d_in + d_out))
    return jax.random.uniform(key, (d_in, d_out), jnp.float32, -lim, lim)


def build_params(key, *, n_vocab, d_input, d_model, d_inner, n_layer, n_head, conv_k):
    assert d_model % n_head == 0
    assert conv_k % 2 == 1
    keys = iter(jax.random.split(key, 4 + 16 * n_layer))
    nk = lambda: next(keys)
    wdt = jnp.bfloat16                      # MXU weight storage dtype

    def lin(d_in, d_out):
        return {"w": _xavier(nk(), d_in, d_out).astype(wdt),
                "b": jnp.zeros((1, d_out), jnp.float32)}

    def ln(d):
        return {"g": jnp.ones((1, d), jnp.float32),
                "b": jnp.zeros((1, d), jnp.float32)}

    def ffn_p():
        return {"ln": ln(d_model), "lin1": lin(d_model, d_inner),
                "lin2": lin(d_inner, d_model)}

    def block():
        D, dh = d_model, d_model // n_head
        # fused QKV weight; 1/sqrt(dh) softmax scale folded into the Q columns
        q_w = _xavier(nk(), D, D) * (1.0 / math.sqrt(dh))
        k_w = _xavier(nk(), D, D)
        v_w = _xavier(nk(), D, D)
        qkv = {"w": jnp.concatenate([q_w, k_w, v_w], axis=1).astype(wdt),
               "b": jnp.zeros((1, 3 * D), jnp.float32)}
        # GLU pointwise conv1: value|gate weights concatenated -> single matmul
        pw1_w = jnp.concatenate([_xavier(nk(), D, D), _xavier(nk(), D, D)], axis=1)
        pw1 = {"w": pw1_w.astype(wdt), "b": jnp.zeros((1, 2 * D), jnp.float32)}
        return {
            "ffn1": ffn_p(),
            "mhsa": {"ln": ln(D), "qkv": qkv, "o": lin(D, D)},
            "conv": {"ln": ln(D), "pw1": pw1,
                     "dw_w": 0.1 * jax.random.normal(nk(), (conv_k, D), jnp.float32),
                     "dw_b": jnp.zeros((1, D), jnp.float32),
                     "bn_g": jnp.ones((1, D), jnp.float32),
                     "bn_b": jnp.zeros((1, D), jnp.float32),
                     "bn_m": jnp.zeros((1, D), jnp.float32),
                     "bn_v": jnp.ones((1, D), jnp.float32),
                     "pw2": lin(D, D)},
            "ffn2": ffn_p(),
            "ln_out": ln(D),
        }

    return {"emb": lin(d_input, d_model),
            "layers": [block() for _ in range(n_layer)],
            "output": lin(d_model, n_vocab)}


def sinusoidal_pe(T, D):
    pos = jnp.arange(T, dtype=jnp.float32)[:, None]
    i = jnp.arange(D // 2, dtype=jnp.float32)[None, :]
    angle = pos / jnp.power(10000.0, 2.0 * i / D)
    pe = jnp.zeros((T, D), jnp.float32)
    pe = pe.at[:, 0::2].set(jnp.sin(angle))
    pe = pe.at[:, 1::2].set(jnp.cos(angle))
    return pe


# ----------------------------- forward pass -----------------------------

def conformer_forward(params, seq, pe, *, n_head, conv_k):
    # seq: (B, T, d_input) f32;  mask=None path of ConformerNet.forward
    B, T, d_input = seq.shape
    D = params["emb"]["w"].shape[1]
    H = n_head
    dh = D // H
    M = B * T
    seq2d = seq.reshape(M, d_input)

    # --- embedding with positional encoding fused into the epilogue ---
    # TODO(synk): exact pynn positional-encoding/scaling variant unknown; standard
    # sinusoidal PE added here (dropout is identity in eval mode).
    tm_pe = _divisor_tile(T)
    if tm_pe is not None:
        n_t_blocks = T // tm_pe
        pe_spec = pl.BlockSpec((tm_pe, D), lambda i, j: (i % n_t_blocks, 0))
        x = fused_linear(seq2d, params["emb"]["w"], params["emb"]["b"],
                         add=pe, add_spec=pe_spec, tm=tm_pe)
    else:
        x = fused_linear(seq2d, params["emb"]["w"], params["emb"]["b"],
                         add=jnp.tile(pe, (B, 1)))

    def ffn(x2d, p, scale, post_ln_p=None):
        h = fused_linear(x2d, p["lin1"]["w"], p["lin1"]["b"],
                         prologue="ln", p_g=p["ln"]["g"], p_b=p["ln"]["b"],
                         act="swish", out_dtype=jnp.bfloat16)          # bf16 hidden
        kwargs = {}
        if post_ln_p is not None:                                      # fused ln_out
            kwargs = dict(post_ln=True, post_g=post_ln_p["g"], post_b=post_ln_p["b"])
        return fused_linear(h, p["lin2"]["w"], p["lin2"]["b"],
                            add=x2d, y_scale=scale, **kwargs)

    def mhsa(x2d, p):
        qkv = fused_linear(x2d, p["qkv"]["w"], p["qkv"]["b"],
                           prologue="ln", p_g=p["ln"]["g"], p_b=p["ln"]["b"],
                           out_dtype=jnp.bfloat16)                     # (M, 3D) bf16
        qkv = qkv.reshape(B, T, 3, H, dh)
        q = jnp.transpose(qkv[:, :, 0], (0, 2, 1, 3))                  # (B,H,T,dh)
        k = jnp.transpose(qkv[:, :, 1], (0, 2, 1, 3))
        v = jnp.transpose(qkv[:, :, 2], (0, 2, 1, 3))
        o = attention(q, k, v)                                         # (B,H,T,dh) bf16
        o2 = jnp.transpose(o, (0, 2, 1, 3)).reshape(M, D)
        return fused_linear(o2, p["o"]["w"], p["o"]["b"], add=x2d)

    def conv_module(x2d, p):
        h = fused_linear(x2d, p["pw1"]["w"], p["pw1"]["b"],
                         prologue="ln", p_g=p["ln"]["g"], p_b=p["ln"]["b"],
                         act="glu", out_dtype=jnp.bfloat16)            # (M, D) bf16
        out = conv_bn_pw2(h.reshape(B, T, D), p, x2d.reshape(B, T, D), K=conv_k)
        return out.reshape(M, D)

    for lp in params["layers"]:
        x = ffn(x, lp["ffn1"], 0.5)                       # x + 0.5*FFN(x)
        x = mhsa(x, lp["mhsa"])                           # x + MHSA(x)
        x = conv_module(x, lp["conv"])                    # x + Conv(x)
        x = ffn(x, lp["ffn2"], 0.5, post_ln_p=lp["ln_out"])   # + fused final LN

    # self.project is None (d_project == d_model); final vocab projection with
    # large row tiles and capped N tiles (resident-weight + out-tile VMEM bound).
    n_vocab = params["output"]["w"].shape[1]
    tn_out = n_vocab if n_vocab <= 512 else 512
    logits = fused_linear(x, params["output"]["w"], params["output"]["b"],
                          tm=min(M, 512), tn=tn_out)
    return logits.reshape(B, T, n_vocab), None            # (out, mask) with mask=None


# ----------------------------- demo -----------------------------

if __name__ == "__main__":
    B, T = 2, 16
    n_vocab, d_input, d_model, n_head, n_layer = 32, 16, 64, 4, 2
    d_inner = 4 * d_model
    conv_k = 7

    key = jax.random.PRNGKey(0)
    pkey, xkey = jax.random.split(key)
    params = build_params(pkey, n_vocab=n_vocab, d_input=d_input, d_model=d_model,
                          d_inner=d_inner, n_layer=n_layer, n_head=n_head,
                          conv_k=conv_k)
    seq = jax.random.normal(xkey, (B, T, d_input), jnp.float32)
    pe = sinusoidal_pe(T, d_model)            # precomputed once, outside per-call path

    logits, mask = conformer_forward(params, seq, pe, n_head=n_head, conv_k=conv_k)
    logits = jax.block_until_ready(logits)
    assert logits.shape == (B, T, n_vocab)
    assert bool(jnp.all(jnp.isfinite(logits)))
    print("KERNEL_OK")
</pallas_src>

<mosaic_0001>
module attributes {stable_mosaic.version = 11 : i64} {
  func.func @_fused_linear_kernel(%arg0: i32, %arg1: i32, %arg2: memref<16x16xf32, #tpu.memory_space<vmem>>, %arg3: memref<16x64xbf16, #tpu.memory_space<vmem>>, %arg4: memref<1x64xf32, #tpu.memory_space<vmem>>, %arg5: memref<16x64xf32, #tpu.memory_space<vmem>>, %arg6: memref<16x64xf32, #tpu.memory_space<vmem>>) attributes {dimension_semantics = [#tpu.dimension_semantics<parallel>, #tpu.dimension_semantics<parallel>], iteration_bounds = array<i64: 2, 1>, scalar_prefetch = 0 : i64, scratch_operands = 0 : i64, tpu.core_type = #tpu.core_type<tc>, window_params = [{transform_indices = @transform_0, window_bounds = array<i64: 16, 16>}, {pipeline_mode = #tpu.pipeline_mode<synchronous>, transform_indices = @transform_1, window_bounds = array<i64: 16, 64>}, {pipeline_mode = #tpu.pipeline_mode<synchronous>, transform_indices = @transform_2, window_bounds = array<i64: 1, 64>}, {transform_indices = @transform_3, window_bounds = array<i64: 16, 64>}, {transform_indices = @transform_4, window_bounds = array<i64: 16, 64>}]} {
    %c0 = arith.constant 0 : index
    %c0_0 = arith.constant 0 : index
    %0 = vector.load %arg2[%c0, %c0_0] : memref<16x16xf32, #tpu.memory_space<vmem>>, vector<16x16xf32>
    %1 = arith.truncf %0 : vector<16x16xf32> to vector<16x16xbf16>
    %c0_1 = arith.constant 0 : index
    %c0_2 = arith.constant 0 : index
    %2 = vector.load %arg3[%c0_1, %c0_2] : memref<16x64xbf16, #tpu.memory_space<vmem>>, vector<16x64xbf16>
    %c0_3 = arith.constant 0 : index
    %c0_4 = arith.constant 0 : index
    %3 = vector.load %arg4[%c0_3, %c0_4] : memref<1x64xf32, #tpu.memory_space<vmem>>, vector<1x64xf32>
    %cst = arith.constant dense<0.000000e+00> : vector<16x64xf32>
    %4 = tpu.matmul %1, %2, %cst {dimension_numbers = #tpu.dot_dimension_numbers<[1], [0], [0], [1], [0, 0, 1, 1], [], []>} : vector<16x16xbf16>, vector<16x64xbf16>, vector<16x64xf32> -> vector<16x64xf32>
    %5 = vector.broadcast %3 : vector<1x64xf32> to vector<16x64xf32>
    %6 = arith.addf %4, %5 : vector<16x64xf32>
    %c0_5 = arith.constant 0 : index
    %c0_6 = arith.constant 0 : index
    %7 = vector.load %arg5[%c0_5, %c0_6] : memref<16x64xf32, #tpu.memory_space<vmem>>, vector<16x64xf32>
    %8 = arith.addf %7, %6 : vector<16x64xf32>
    %c0_7 = arith.constant 0 : index
    %c0_8 = arith.constant 0 : index
    %9 = vector.load %arg6[%c0_7, %c0_8] : memref<16x64xf32, #tpu.memory_space<vmem>>, vector<16x64xf32>
    tpu.vector_store %arg6[%c0_7, %c0_8], %8 {strides = array<i32>} : memref<16x64xf32, #tpu.memory_space<vmem>>, vector<16x64xf32>,
    return
  }
  func.func @transform_0(%arg0: i32, %arg1: i32) -> (i32, i32) {
    %c0_i32 = arith.constant 0 : i32
    %c0_i32_0 = arith.constant 0 : i32
    return %arg0, %c0_i32 : i32, i32
  }
  func.func @transform_1(%arg0: i32, %arg1: i32) -> (i32, i32) {
    %c0_i32 = arith.constant 0 : i32
    %c0_i32_0 = arith.constant 0 : i32
    %c0_i32_1 = arith.constant 0 : i32
    return %c0_i32, %c0_i32_0 : i32, i32
  }
  func.func @transform_2(%arg0: i32, %arg1: i32) -> (i32, i32) {
    %c0_i32 = arith.constant 0 : i32
    %c0_i32_0 = arith.constant 0 : i32
    %c0_i32_1 = arith.constant 0 : i32
    return %c0_i32, %c0_i32_0 : i32, i32
  }
  func.func @transform_3(%arg0: i32, %arg1: i32) -> (i32, i32) {
    %c1_i32 = arith.constant 1 : i32
    %c0_i32 = arith.constant 0 : i32
    %0 = arith.cmpi eq, %c1_i32, %c0_i32 : i32
    %c1_i32_0 = arith.constant 1 : i32
    %1 = arith.select %0, %c1_i32_0, %c1_i32 : i32
    %2 = arith.remsi %arg0, %1 : i32
    %c0_i32_1 = arith.constant 0 : i32
    %3 = arith.cmpi ne, %2, %c0_i32_1 : i32
    %c0_i32_2 = arith.constant 0 : i32
    %4 = arith.cmpi slt, %2, %c0_i32_2 : i32
    %c0_i32_3 = arith.constant 0 : i32
    %5 = arith.cmpi slt, %1, %c0_i32_3 : i32
    %6 = arith.xori %4, %5 : i1
    %7 = arith.andi %6, %3 : i1
    %8 = arith.addi %2, %1 : i32
    %9 = arith.select %7, %8, %2 : i32
    %c0_i32_4 = arith.constant 0 : i32
    %c0_i32_5 = arith.constant 0 : i32
    return %9, %c0_i32_4 : i32, i32
  }
  func.func @transform_4(%arg0: i32, %arg1: i32) -> (i32, i32) {
    %c0_i32 = arith.constant 0 : i32
    return %arg0, %arg1 : i32, i32
  }
}

</mosaic_0001>

<llo_original>
// kernel: tpu_custom_call.1
$region0: #{tpu_custom_call.1}
  #allocation0 [shape = 'u32[]', space=smem, size = 0x4, offset = 0x4, fixed_abs, tag = 'smem constant byte address 0x4 - core index']
  #allocation1 [shape = 'u32[144,128]{1,0:T(1,128)}', space=vmem, size = 0x12000, scoped, tag = 'internal scratch']
  %s0 = inlined_call_operand.vmem [shape: f32[32,16], index: 0, kind: input, shape index: {}]
  %s1 = inlined_call_operand.vmem [shape: bf16[16,64], index: 1, kind: input, shape index: {}]
  %s2 = inlined_call_operand.vmem [shape: f32[1,64], index: 2, kind: input, shape index: {}]
  %s3 = inlined_call_operand.vmem [shape: f32[16,64], index: 3, kind: input, shape index: {}]
  %s4 = inlined_call_operand.hbm [shape: f32[32,64], index: 4, kind: output, shape index: {}]
  %s5 = sld [smem:[#allocation0]]
  $region49: #{tpu_custom_call.1} parent=0
    _
  %s7 = ssub.s32 1, %s5
  %s8 = scalar_select 0, %s7, %s5
  $region1: #{tpu_custom_call.1} parent=0
    #allocation2 [shape = 'u8[16384]{0}', space=vmem, size = 0x4000, scoped, tag = 'output window, operand 0']
    #allocation3 [shape = 's32[2]{0}', space=sflag, size = 0x8, scoped, tag = 'scoped memory for tpu_custom_call.1']
    %9 = vsyncpa [#allocation3], 0
    %s10 = scalar_lea.sflag [#allocation3], 1
    %11 = vsyncpa %s10, 0
    loop: start=0, step=1, limit=4
    $region2: #{tpu_custom_call.1} parent=1 // loop_pre_header
      _
    $region3: #{tpu_custom_call.1} parent=1 // loop_header
      %s13 = sphi 0, %s17
      %p14 = scmp.ge.s32.totalorder %s13, 4
      %s20 = sphi 0, %s32
      %s21 = sphi 0, %s28
      %s22 = sphi 0, %s20
      %s23 = sphi 0, %s21
      %s24 = sphi 0, %s22
      %s25 = sphi 0, %s23
      %s35 = sphi 0, %s37
      %s38 = sphi 0, %s35
      %s39 = sphi 0, %s38
      %s55 = sphi 0, %s39
      %s59 = sphi 0, %s59
      %s61 = sphi 0, %s59
      %s62 = sphi 0, %s61
      %s76 = sphi 0, %s62
      %s80 = sphi 0, %s80
      %s82 = sphi 0, %s80
      %s83 = sphi 0, %s82
      %s97 = sphi 0, %s83
      %s101 = sphi 0, %s101
      %s103 = sphi 0, %s101
      %s104 = sphi 0, %s103
      %s118 = sphi 0, %s104
      %s126 = sphi 0, %s128
      %s129 = sphi 0, %s126
      %s130 = sphi 0, %s129
      %s146 = sphi 0, %s130
    $region4: #{tpu_custom_call.1} parent=1 // loop_header_branch
      %16 = sbr.rel (%p14) target = $region8
    $region5: #{tpu_custom_call.1} parent=1 // loop_body
      %s18 = ssub.s32 %s13, 1
      %s19 = ssub.s32 %s13, 2
      %s26 = sadd.s32 1, %s21
      %p27 = scmp.ge.s32.totalorder %s26, 1
      %s28 = scalar_select %p27, 0, %s26
      %s29 = sadd.s32 1, %s20
      %s30 = scalar_select %p27, %s29, %s20
      %p31 = scmp.ge.s32.totalorder %s30, 2
      %s32 = scalar_select %p31, 0, %s30
      %s33 = ssub.s32 %s20, %s32
      %p34 = scmp.eq.s32.totalorder %s33, 0
      %s36 = sadd.s32 %s35, 1
      %s37 = scalar_select %p34, %s35, %s36
      %p40 = pneg %p34
      %p41 = scmp.eq.s32.totalorder %s13, 1
      %p42 = por %p40, %p41
      %p43 = scmp.ne.s32.totalorder %s35, %s38
      %p44 = scmp.eq.s32.totalorder %s13, 0
      %p45 = por %p43, %p44
      %p46 = scmp.ne.s32.totalorder %s35, %s38
      %p47 = scmp.eq.s32.totalorder %s18, 1
      %p48 = por %p46, %p47
      %p49 = scmp.ne.s32.totalorder %s38, %s39
      %p50 = scmp.eq.s32.totalorder %s18, 0
      %p51 = por %p49, %p50
      %p52 = scmp.ne.s32.totalorder %s38, %s39
      %p53 = scmp.eq.s32.totalorder %s19, 1
      %p54 = por %p52, %p53
      %p56 = scmp.ne.s32.totalorder %s39, %s55
      %p57 = scmp.eq.s32.totalorder %s19, 0
      %p58 = por %p56, %p57
      %s60 = sadd.s32 %s59, 1
      %p63 = scmp.eq.s32.totalorder %s13, 1
      %p64 = scmp.ne.s32.totalorder %s59, %s61
      %p65 = scmp.eq.s32.totalorder %s13, 0
      %p66 = por %p64, %p65
      %p67 = scmp.ne.s32.totalorder %s59, %s61
      %p68 = scmp.eq.s32.totalorder %s18, 1
      %p69 = por %p67, %p68
      %p70 = scmp.ne.s32.totalorder %s61, %s62
      %p71 = scmp.eq.s32.totalorder %s18, 0
      %p72 = por %p70, %p71
      %p73 = scmp.ne.s32.totalorder %s61, %s62
      %p74 = scmp.eq.s32.totalorder %s19, 1
      %p75 = por %p73, %p74
      %p77 = scmp.ne.s32.totalorder %s62, %s76
      %p78 = scmp.eq.s32.totalorder %s19, 0
      %p79 = por %p77, %p78
      %s81 = sadd.s32 %s80, 1
      %p84 = scmp.eq.s32.totalorder %s13, 1
      %p85 = scmp.ne.s32.totalorder %s80, %s82
      %p86 = scmp.eq.s32.totalorder %s13, 0
      %p87 = por %p85, %p86
      %p88 = scmp.ne.s32.totalorder %s80, %s82
      %p89 = scmp.eq.s32.totalorder %s18, 1
      %p90 = por %p88, %p89
      %p91 = scmp.ne.s32.totalorder %s82, %s83
      %p92 = scmp.eq.s32.totalorder %s18, 0
      %p93 = por %p91, %p92
      %p94 = scmp.ne.s32.totalorder %s82, %s83
      %p95 = scmp.eq.s32.totalorder %s19, 1
      %p96 = por %p94, %p95
      %p98 = scmp.ne.s32.totalorder %s83, %s97
      %p99 = scmp.eq.s32.totalorder %s19, 0
      %p100 = por %p98, %p99
      %s102 = sadd.s32 %s101, 1
      %p105 = scmp.eq.s32.totalorder %s13, 1
      %p106 = scmp.ne.s32.totalorder %s101, %s103
      %p107 = scmp.eq.s32.totalorder %s13, 0
      %p108 = por %p106, %p107
      %p109 = scmp.ne.s32.totalorder %s101, %s103
      %p110 = scmp.eq.s32.totalorder %s18, 1
      %p111 = por %p109, %p110
      %p112 = scmp.ne.s32.totalorder %s103, %s104
      %p113 = scmp.eq.s32.totalorder %s18, 0
      %p114 = por %p112, %p113
      %p115 = scmp.ne.s32.totalorder %s103, %s104
      %p116 = scmp.eq.s32.totalorder %s19, 1
      %p117 = por %p115, %p116
      %p119 = scmp.ne.s32.totalorder %s104, %s118
      %p120 = scmp.eq.s32.totalorder %s19, 0
      %p121 = por %p119, %p120
      %s122 = ssub.s32 %s20, %s32
      %s123 = ssub.s32 %s21, %s28
      %s124 = sor.u32 %s122, %s123
      %p125 = scmp.eq.s32.totalorder %s124, 0
      %s127 = sadd.s32 %s126, 1
      %s128 = scalar_select %p125, %s126, %s127
      %p131 = pneg %p125
      %p132 = scmp.eq.s32.totalorder %s13, 1
      %p133 = por %p131, %p132
      %p134 = scmp.ne.s32.totalorder %s126, %s129
      %p135 = scmp.eq.s32.totalorder %s13, 0
      %p136 = por %p134, %p135
      %p137 = scmp.ne.s32.totalorder %s126, %s129
      %p138 = scmp.eq.s32.totalorder %s18, 1
      %p139 = por %p137, %p138
      %p140 = scmp.ne.s32.totalorder %s129, %s130
      %p141 = scmp.eq.s32.totalorder %s18, 0
      %p142 = por %p140, %p141
      %p143 = scmp.ne.s32.totalorder %s129, %s130
      %p144 = scmp.eq.s32.totalorder %s19, 1
      %p145 = por %p143, %p144
      %p147 = scmp.ne.s32.totalorder %s130, %s146
      %p148 = scmp.eq.s32.totalorder %s19, 0
      %p149 = por %p147, %p148
      %p150 = scmp.le.s32.totalorder 1, %s13
      %p151 = scmp.lt.s32.totalorder %s13, 3
      %p152 = pnand %p150, %p151
      %p153 = pneg %p152
      // Predicated region
      $region9: #{tpu_custom_call.1} parent=5 // pred_check
        _
      $region10: #{tpu_custom_call.1} parent=5 // pred_check_branch
        %155 = sbr.rel (%p152) target = $region12
      $region11: #{tpu_custom_call.1} parent=5 // pred_region
        %s156 = ssub.s32 %s13, 1
        // Predicated region
        $region13: #{tpu_custom_call.1} parent=11 // pred_check
          %p157 = pneg %p72
        $region14: #{tpu_custom_call.1} parent=11 // pred_check_branch
          %159 = sbr.rel (%p157) target = $region16
        $region15: #{tpu_custom_call.1} parent=11 // pred_region
          _
        $region16: #{tpu_custom_call.1} parent=11 // pred_fallthru
          _
        // Predicated region
        $region17: #{tpu_custom_call.1} parent=11 // pred_check
          %p160 = pneg %p93
        $region18: #{tpu_custom_call.1} parent=11 // pred_check_branch
          %162 = sbr.rel (%p160) target = $region20
        $region19: #{tpu_custom_call.1} parent=11 // pred_region
          _
        $region20: #{tpu_custom_call.1} parent=11 // pred_fallthru
          _
        // Predicated region
        $region21: #{tpu_custom_call.1} parent=11 // pred_check
          %p163 = pneg %p114
        $region22: #{tpu_custom_call.1} parent=11 // pred_check_branch
          %165 = sbr.rel (%p163) target = $region24
        $region23: #{tpu_custom_call.1} parent=11 // pred_region
          _
        $region24: #{tpu_custom_call.1} parent=11 // pred_fallthru
          _
      $region12: #{tpu_custom_call.1} parent=5 // pred_fallthru
        _
      %p166 = scmp.lt.s32.totalorder %s13, 2
      // Predicated region
      $region25: #{tpu_custom_call.1} parent=5 // pred_check
        %p167 = pneg %p166
      $region26: #{tpu_custom_call.1} parent=5 // pred_check_branch
        %169 = sbr.rel (%p167) target = $region28
      $region27: #{tpu_custom_call.1} parent=5 // pred_region
        // Predicated region
        $region29: #{tpu_custom_call.1} parent=27 // pred_check
          %p170 = pneg %p45
        $region30: #{tpu_custom_call.1} parent=27 // pred_check_branch
          %172 = sbr.rel (%p170) target = $region32
        $region31: #{tpu_custom_call.1} parent=27 // pred_region
          %s173 = smul.u32 2, %s20
          %p174 = scmp.lt.s32.totalorder %s173, 3
          %s175 = scalar_select %p174, %s173, 3
          %s176 = smul.addr %s175, 8
          %s177 = scalar_lea.vmem %s0, %s176
          %s178 = smul.u32 2, %s20
        $region32: #{tpu_custom_call.1} parent=27 // pred_fallthru
          _
      $region28: #{tpu_custom_call.1} parent=5 // pred_fallthru
        _
      %p179 = scmp.le.s32.totalorder 1, %s13
      %p180 = scmp.lt.s32.totalorder %s13, 3
      %p181 = pnand %p179, %p180
      %p182 = pneg %p181
      // Predicated region
      $region33: #{tpu_custom_call.1} parent=5 // pred_check
        _
      $region34: #{tpu_custom_call.1} parent=5 // pred_check_branch
        %184 = sbr.rel (%p181) target = $region36
      $region35: #{tpu_custom_call.1} parent=5 // pred_region
        %s185 = ssub.s32 %s13, 1
        %s186 = smul.u32 2, %s22
        %p187 = scmp.lt.s32.totalorder %s186, 3
        %s188 = scalar_select %p187, %s186, 3
        %s189 = smul.addr %s188, 8
        %s190 = scalar_lea.vmem %s0, %s189
        %p191 = pneg %p51
        %p192 = pneg %p48
        %p193 = pneg %p72
        %p194 = pneg %p69
        %p195 = pneg %p93
        %p196 = pneg %p90
        %p197 = pneg %p114
        %p198 = pneg %p111
        %p199 = pneg %p142
        %p200 = pneg %p139
        %s201 = sand.u32 %s129, 1
        %s202 = scalar_lea.sflag [#allocation3], %s201
        %s203 = sand.u32 %s129, 1
        %s204 = smul.addr %s203, 16
        %s205 = scalar_lea.vmem [#allocation2], %s204
        %s206 = smul.u32 2, %s22
        %p207 = scmp.lt.s32.totalorder %s206, 3
        %s208 = scalar_select %p207, %s206, 3
        %s209 = smul.addr %s208, 8
        %s210 = scalar_lea.vmem %s0, %s209
        %s211 = smul.u32 2, %s22
        %s212 = smul.u32 2, %s22
        %v214 = vld [vmem:[%s210] sm:$0xff]
        %v215 = vld [vmem:[%s210 + $0x8] sm:$0xff]
        %v216 = vpack.c.bf16 %v215, %v214
        %v217 = vld [vmem:[%s1] sm:$0xf]
        %v218 = vld [vmem:[%s1 + $0x4] sm:$0xf]
        %v219 = vld [vmem:[%s2] sm:$0x1]
        %v221 = vlaneseq
        %v222 = vshrl.u32 %v221, 7
        %v223 = vsub.s32 0, %v222
        %v224 = vrot.slane %v219, %v223
        %v228 = vunpack.c.l.b16 %v217
        %v229 = vunpack.c.l.b16 %v218
        %v230 = vpack.c.b16 %v229, %v228
        %vm232 = vcmask 130048
        %v234 = vsel %vm232, %v216, 0
        %236 = vmatprep.subr.bf16.mxu0 0
        %237 = vmatpush1.bf16.msra.mxu0 %v230
        %238 = vmatprep.subr.bf16.mxu0 0
        %239 = vmatpush1.bf16.msra.mxu0 0
        %240 = vmatprep.subr.bf16.mxu0 0
        %241 = vmatpush1.bf16.msra.mxu0 0
        %242 = vmatprep.subr.bf16.mxu0 0
        %243 = vmatpush1.bf16.msra.mxu0 0
        %244 = vmatprep.subr.bf16.mxu0 0
        %245 = vmatpush1.bf16.msra.mxu0 0
        %246 = vmatprep.subr.bf16.mxu0 0
        %247 = vmatpush1.bf16.msra.mxu0 0
        %248 = vmatprep.subr.bf16.mxu0 0
        %249 = vmatpush1.bf16.msra.mxu0 0
        %250 = vmatprep.subr.bf16.mxu0 0
        %251 = vmatpush1.bf16.msra.mxu0 0
        %252 = vmatprep.subr.bf16.mxu0 0
        %253 = vmatpush1.bf16.msra.mxu0 0
        %254 = vmatprep.subr.bf16.mxu0 0
        %255 = vmatpush1.bf16.msra.mxu0 0
        %256 = vmatprep.subr.bf16.mxu0 0
        %257 = vmatpush1.bf16.msra.mxu0 0
        %258 = vmatprep.subr.bf16.mxu0 0
        %259 = vmatpush1.bf16.msra.mxu0 0
        %260 = vmatprep.subr.bf16.mxu0 0
        %261 = vmatpush1.bf16.msra.mxu0 0
        %262 = vmatprep.subr.bf16.mxu0 0
        %263 = vmatpush1.bf16.msra.mxu0 0
        %264 = vmatprep.subr.bf16.mxu0 0
        %265 = vmatpush1.bf16.msra.mxu0 0
        %266 = vmatprep.subr.bf16.mxu0 0
        %267 = vmatpush1.bf16.msra.mxu0 0
        %268 = vmatprep.mubr.bf16.mxu0 0
        %269 = vmatmul.mubr.bf16.gmra.mrb[0].mxu0 %v234
        %v270 = vpop.f32.mrb[0].mxu0
        %v271 = vadd.f32 %v224, %v270
        %v272 = vpop.f32.mrb[0].mxu0
        %v273 = vpop.f32.mrb[0].mxu0
        %v274 = vadd.f32 %v224, %v273
        %v275 = vpop.f32.mrb[0].mxu0
        %276 = vdwg.mxu0
        %v277 = vld [vmem:[%s3] sm:$0xff]
        %v278 = vld [vmem:[%s3 + $0x8] sm:$0xff]
        %v279 = vadd.f32 %v277, %v271
        %v280 = vadd.f32 %v278, %v274
        %vm281 = vcmask 523264
        %282 = vst.msk [vmem:[%s205] sm:$0xff] %vm281, %v279
        %283 = vst.msk [vmem:[%s205 + $0x8] sm:$0xff] %vm281, %v280
        %s284 = sand.u32 %s129, 1
        %s285 = scalar_lea.sflag [#allocation3], %s284
        %s286 = sand.u32 %s129, 1
        %s287 = smul.addr %s286, 16
        %s288 = scalar_lea.vmem [#allocation2], %s287
        // Predicated region
        $region37: #{tpu_custom_call.1} parent=35 // pred_check
          %p289 = pneg %p139
        $region38: #{tpu_custom_call.1} parent=35 // pred_check_branch
          %291 = sbr.rel (%p289) target = $region40
        $region39: #{tpu_custom_call.1} parent=35 // pred_region
          %s292 = smul.u32 2, %s22
          %s294 = ssub.s32 256, 256
          %295 = vsyncadd %s285, %s294
          %s296 = sadd.s32 %s23, %s292
          %s297 = smul.addr %s296, 128
          %s298 = scalar_lea.hbm %s4, %s297
          %s299 = sshll.u32 %s288, 4
          %s300 = int_to_ptr.vmem [resolvable:$true] %s299
          %305 = dma.vmem_to_hbm [thread:$0]  %s300, 256, %s298, %s285, 128, 128, 8
        $region40: #{tpu_custom_call.1} parent=35 // pred_fallthru
          _
      $region36: #{tpu_custom_call.1} parent=5 // pred_fallthru
        _
      %p306 = scmp.le.s32.totalorder 2, %s13
      // Predicated region
      $region41: #{tpu_custom_call.1} parent=5 // pred_check
        %p307 = pneg %p306
      $region42: #{tpu_custom_call.1} parent=5 // pred_check_branch
        %309 = sbr.rel (%p307) target = $region44
      $region43: #{tpu_custom_call.1} parent=5 // pred_region
        %s310 = ssub.s32 %s13, 2
        // Predicated region
        $region45: #{tpu_custom_call.1} parent=43 // pred_check
          %p311 = pneg %p145
        $region46: #{tpu_custom_call.1} parent=43 // pred_check_branch
          %313 = sbr.rel (%p311) target = $region48
        $region47: #{tpu_custom_call.1} parent=43 // pred_region
          %s314 = sand.u32 %s130, 1
          %s315 = scalar_lea.sflag [#allocation3], %s314
          %s316 = sand.u32 %s130, 1
          %s317 = smul.addr %s316, 16
          %s318 = scalar_lea.vmem [#allocation2], %s317
          %319 = dma.done %s315, 256
        $region48: #{tpu_custom_call.1} parent=43 // pred_fallthru
          _
      $region44: #{tpu_custom_call.1} parent=5 // pred_fallthru
        _
    $region6: #{tpu_custom_call.1} parent=1 // loop_footer
      %s17 = sadd.s32 1, %s13
    $region7: #{tpu_custom_call.1} parent=1 // loop_footer_branch
      %12 = sbr.rel target = $region3
    $region8: #{tpu_custom_call.1} parent=1 // loop_exit
      _
    %320 = vsyncpa [#allocation3], 1
    %s321 = scalar_lea.sflag [#allocation3], 1
    %322 = vsyncpa %s321, 1

</llo_original>
